<compile_context>
chip_gen: v5e
topology: v5e:2x2
jax: 0.10.0
libtpu: 0.0.40
codegen_flags: <defaults>
</compile_context>

<pallas_src>
import math
from typing import NamedTuple

import jax
import jax.numpy as jnp
from jax.experimental import pallas as pl
from jax.experimental.pallas import tpu as pltpu


_ROW_PACK_TARGET = 16            # target rows packed into the lane dim (16*32 = 512 lanes)
_MAX_PACKED_LANES = 512          # cap on R*E (keeps block-diagonal MXU FLOPs cheap)
_TM_MAX = 16384                  # hard cap on packed rows per tile
_VMEM_LIMIT_BYTES = 40 * 1024 * 1024    # scoped-VMEM ceiling (safe on v5e/v6e/v7x)
_VMEM_BLOCK_BUDGET = 32 * 1024 * 1024   # double-buffered row-tile budget (headroom left
                                        # for weight/bias buffers + internal scratch)


def _packed_linear_kernel(x_ref, w_ref, b_ref, o_ref):
    # x_ref: [TM, R*F_total]  w_ref: [R*F_total, R*E]  b_ref: [1, R*E]  o_ref: [TM, R*E]
    acc = jnp.dot(x_ref[...], w_ref[...], preferred_element_type=jnp.float32)
    o_ref[...] = (acc + b_ref[...]).astype(o_ref.dtype)


class PackedEmbeddingParams(NamedTuple):
    w_pack: jax.Array        # [R*F_total, R*E] block-diagonal, zero rows for ignored features
    b_pack: jax.Array        # [1, R*E]
    row_pack: int            # R
    feature_dim: int
    total_feature_dim: int
    embeded_dim: int


def _choose_row_pack(embeded_dim):
    # Minimal R with (R*E) % 128 == 0 (always a power of two), then grow towards
    # _ROW_PACK_TARGET while the packed output width stays <= _MAX_PACKED_LANES.
    r = 128 // math.gcd(embeded_dim, 128)
    while r < _ROW_PACK_TARGET and 2 * r * embeded_dim <= _MAX_PACKED_LANES:
        r *= 2
    return r


def pack_embedding_params(weight, bias, feature_dim, total_feature_dim):
    """Build the packed block-diagonal weight/bias ONCE (hoisted out of forward).

    weight : [feature_dim, embeded_dim]  (already transposed vs. torch nn.Linear.weight)
    bias   : [embeded_dim]
    """
    assert weight.shape[0] == feature_dim
    assert total_feature_dim >= feature_dim
    embeded_dim = weight.shape[1]
    r = _choose_row_pack(embeded_dim)

    # Zero rows absorb the ignored trailing features (torch's x[..., :feature_dim]),
    # so the kernel consumes the full input ref — no in-kernel slicing.
    w_full = jnp.zeros((total_feature_dim, embeded_dim), weight.dtype)
    w_full = w_full.at[:feature_dim, :].set(weight)
    eye = jnp.eye(r, dtype=weight.dtype)
    w_pack = (eye[:, None, :, None] * w_full[None, :, None, :]).reshape(
        r * total_feature_dim, r * embeded_dim)
    b_pack = jnp.tile(bias.astype(weight.dtype), r).reshape(1, r * embeded_dim)
    return PackedEmbeddingParams(w_pack, b_pack, r, feature_dim,
                                 total_feature_dim, embeded_dim)


def _choose_tile_rows(mp, kp, ep, in_itemsize, out_itemsize):
    """Packed rows per tile, from an explicit double-buffered VMEM budget."""
    # VMEM blocks pad the lane dim to a multiple of 128 — account for it.
    kp_pad = -(-kp // 128) * 128
    per_row = 2 * (kp_pad * in_itemsize + ep * out_itemsize)   # 2-deep pipeline
    tm = (min(_TM_MAX, _VMEM_BLOCK_BUDGET // per_row) // 8) * 8
    tm = max(8, tm)
    if mp <= 8:
        return mp                       # single full block (full-dim block shape)
    # Guarantee >= 2 grid steps so both v7x TensorCores get work under
    # dimension_semantics=("parallel",).  half < mp holds for every mp > 8.
    half = -(-mp // 2)                  # ceil(mp / 2)
    half = -(-half // 8) * 8            # round up to a multiple of 8
    return min(tm, half)


def data_embedding_forward(x, params: PackedEmbeddingParams, out_dtype=None):
    """DataEmbedding.forward (eval mode): Linear over the leading feature slice.

    x : [B, N, T, total_feature_dim]  ->  [B, N, T, embeded_dim]
    """
    # TODO(synk): dropout(p=0.1) is identity in eval mode; training-mode RNG
    # dropout is not implemented here.
    b, n, t, f_total = x.shape
    assert f_total == params.total_feature_dim
    r = params.row_pack
    e = params.embeded_dim
    # Perf-review option: pass out_dtype=jnp.bfloat16 to halve the dominant
    # store traffic if the consumer tolerates it (f32 accumulate is kept).
    out_dtype = x.dtype if out_dtype is None else jnp.dtype(out_dtype)

    m = b * n * t
    pad = (-m) % r
    x2d = x.reshape(m, f_total)                       # free reshape
    if pad:
        # No narrow-lane fallback: pad a handful of rows, slice them off later.
        x2d = jnp.pad(x2d, ((0, pad), (0, 0)))
    mp = (m + pad) // r
    kp = r * f_total
    ep = r * e
    x_pack = x2d.reshape(mp, kp)                      # free when pad == 0

    tm = _choose_tile_rows(mp, kp, ep, x.dtype.itemsize, jnp.dtype(out_dtype).itemsize)
    grid = (pl.cdiv(mp, tm),)

    out_pack = pl.pallas_call(
        _packed_linear_kernel,
        out_shape=jax.ShapeDtypeStruct((mp, ep), out_dtype),
        grid_spec=pltpu.PrefetchScalarGridSpec(
            num_scalar_prefetch=0,
            grid=grid,
            in_specs=[
                pl.BlockSpec((tm, kp), lambda i: (i, 0)),
                pl.BlockSpec((kp, ep), lambda i: (0, 0)),
                pl.BlockSpec((1, ep), lambda i: (0, 0)),
            ],
            out_specs=pl.BlockSpec((tm, ep), lambda i: (i, 0)),
        ),
        compiler_params=pltpu.CompilerParams(
            dimension_semantics=("parallel",),
            vmem_limit_bytes=_VMEM_LIMIT_BYTES,
        ),
    )(x_pack, params.w_pack, params.b_pack)

    # [mp, R*E] is byte-identical to row-major [m+pad, E] -> free reshape.
    out2d = out_pack.reshape(mp * r, e)
    if pad:
        out2d = out2d[:m]
    return out2d.reshape(b, n, t, e)


def init_linear_params(key, feature_dim, embeded_dim, dtype=jnp.float32):
    """Deterministic nn.Linear-style init: U(-1/sqrt(fan_in), 1/sqrt(fan_in))."""
    kw, kb = jax.random.split(key)
    bound = 1.0 / math.sqrt(feature_dim)
    weight = jax.random.uniform(
        kw, (feature_dim, embeded_dim), dtype=dtype, minval=-bound, maxval=bound)
    bias = jax.random.uniform(
        kb, (embeded_dim,), dtype=dtype, minval=-bound, maxval=bound)
    return weight, bias


if __name__ == "__main__":
    key = jax.random.PRNGKey(0)
    k_x, k_p, k_x2 = jax.random.split(key, 3)

    # Small shapes consistent with the module's 4-D input convention.
    B, N, T = 2, 4, 16
    feature_dim = 4                     # Linear input dim
    embeded_dim = 32                    # Linear output dim
    F_total = feature_dim + 2           # extra trailing features (ignored, like torch slice)

    weight, bias = init_linear_params(k_p, feature_dim, embeded_dim)
    # Packed weight/bias are built once, outside the forward call path.
    params = pack_embedding_params(weight, bias, feature_dim, F_total)

    # Main path: M = 128 is a multiple of R.
    x = jax.random.normal(k_x, (B, N, T, F_total), dtype=jnp.float32)
    out = jax.block_until_ready(data_embedding_forward(x, params))
    ref = x[..., :feature_dim] @ weight + bias
    assert out.shape == (B, N, T, embeded_dim)
    assert jnp.allclose(out, ref, atol=1e-5, rtol=1e-5)

    # Ragged path: M = 21 is not a multiple of R -> row padding (no narrow fallback).
    x_odd = jax.random.normal(k_x2, (1, 3, 7, F_total), dtype=jnp.float32)
    out_odd = jax.block_until_ready(data_embedding_forward(x_odd, params))
    ref_odd = x_odd[..., :feature_dim] @ weight + bias
    assert out_odd.shape == (1, 3, 7, embeded_dim)
    assert jnp.allclose(out_odd, ref_odd, atol=1e-5, rtol=1e-5)

    print("KERNEL_OK")
</pallas_src>

<mosaic_0001>
module attributes {stable_mosaic.version = 11 : i64} {
  func.func @_packed_linear_kernel(%arg0: i32, %arg1: memref<8x96xf32, #tpu.memory_space<vmem>>, %arg2: memref<96x512xf32, #tpu.memory_space<vmem>>, %arg3: memref<1x512xf32, #tpu.memory_space<vmem>>, %arg4: memref<8x512xf32, #tpu.memory_space<vmem>>) attributes {dimension_semantics = [#tpu.dimension_semantics<parallel>], iteration_bounds = array<i64: 1>, scalar_prefetch = 0 : i64, scratch_operands = 0 : i64, tpu.core_type = #tpu.core_type<tc>, window_params = [{transform_indices = @transform_0, window_bounds = array<i64: 8, 96>}, {pipeline_mode = #tpu.pipeline_mode<synchronous>, transform_indices = @transform_1, window_bounds = array<i64: 96, 512>}, {pipeline_mode = #tpu.pipeline_mode<synchronous>, transform_indices = @transform_2, window_bounds = array<i64: 1, 512>}, {transform_indices = @transform_3, window_bounds = array<i64: 8, 512>}]} {
    %c0 = arith.constant 0 : index
    %c0_0 = arith.constant 0 : index
    %0 = vector.load %arg1[%c0, %c0_0] : memref<8x96xf32, #tpu.memory_space<vmem>>, vector<8x96xf32>
    %c0_1 = arith.constant 0 : index
    %c0_2 = arith.constant 0 : index
    %1 = vector.load %arg2[%c0_1, %c0_2] : memref<96x512xf32, #tpu.memory_space<vmem>>, vector<96x512xf32>
    %cst = arith.constant dense<0.000000e+00> : vector<8x512xf32>
    %2 = tpu.matmul %0, %1, %cst {dimension_numbers = #tpu.dot_dimension_numbers<[1], [0], [0], [1], [0, 0, 1, 1], [], []>} : vector<8x96xf32>, vector<96x512xf32>, vector<8x512xf32> -> vector<8x512xf32>
    %c0_3 = arith.constant 0 : index
    %c0_4 = arith.constant 0 : index
    %3 = vector.load %arg3[%c0_3, %c0_4] : memref<1x512xf32, #tpu.memory_space<vmem>>, vector<1x512xf32>
    %4 = vector.broadcast %3 : vector<1x512xf32> to vector<8x512xf32>
    %5 = arith.addf %2, %4 : vector<8x512xf32>
    %c0_5 = arith.constant 0 : index
    %c0_6 = arith.constant 0 : index
    %6 = vector.load %arg4[%c0_5, %c0_6] : memref<8x512xf32, #tpu.memory_space<vmem>>, vector<8x512xf32>
    tpu.vector_store %arg4[%c0_5, %c0_6], %5 {strides = array<i32>} : memref<8x512xf32, #tpu.memory_space<vmem>>, vector<8x512xf32>,
    return
  }
  func.func @transform_0(%arg0: i32) -> (i32, i32) {
    %c0_i32 = arith.constant 0 : i32
    %c0_i32_0 = arith.constant 0 : i32
    return %arg0, %c0_i32 : i32, i32
  }
  func.func @transform_1(%arg0: i32) -> (i32, i32) {
    %c0_i32 = arith.constant 0 : i32
    %c0_i32_0 = arith.constant 0 : i32
    %c0_i32_1 = arith.constant 0 : i32
    return %c0_i32, %c0_i32_0 : i32, i32
  }
  func.func @transform_2(%arg0: i32) -> (i32, i32) {
    %c0_i32 = arith.constant 0 : i32
    %c0_i32_0 = arith.constant 0 : i32
    %c0_i32_1 = arith.constant 0 : i32
    return %c0_i32, %c0_i32_0 : i32, i32
  }
  func.func @transform_3(%arg0: i32) -> (i32, i32) {
    %c0_i32 = arith.constant 0 : i32
    %c0_i32_0 = arith.constant 0 : i32
    return %arg0, %c0_i32 : i32, i32
  }
}

</mosaic_0001>

<llo_original>
// kernel: tpu_custom_call.1
$region0: #{tpu_custom_call.1}
  #allocation0 [shape = 'u32[]', space=smem, size = 0x4, offset = 0x4, fixed_abs, tag = 'smem constant byte address 0x4 - core index']
  #allocation1 [shape = 'u32[72,128]{1,0:T(1,128)}', space=vmem, size = 0x9000, scoped, tag = 'internal scratch']
  %s0 = inlined_call_operand.hbm [shape: f32[8,96], index: 0, kind: input, shape index: {}]
  %s1 = inlined_call_operand.hbm [shape: f32[96,512], index: 1, kind: input, shape index: {}]
  %s2 = inlined_call_operand.hbm [shape: f32[1,512], index: 2, kind: input, shape index: {}]
  %s3 = inlined_call_operand.hbm [shape: f32[8,512], index: 3, kind: output, shape index: {}]
  %s4 = sld [smem:[#allocation0]]
  $region34: #{tpu_custom_call.1} parent=0
    _
  %s6 = ssub.s32 1, %s4
  %s7 = scalar_select 0, %s6, %s4
  $region1: #{tpu_custom_call.1} parent=0
    #allocation2 [shape = 'u8[4096]{0}', space=vmem, size = 0x1000, scoped, tag = 'input window, operand 0, single buffered']
    #allocation3 [shape = 's32[1]{0}', space=sflag, size = 0x4, scoped, tag = 'scoped memory for tpu_custom_call.1']
    #allocation4 [shape = 's32[1]{0}', space=sflag, size = 0x4, scoped, tag = 'scoped memory for tpu_custom_call.1']
    #allocation5 [shape = 'u8[196608]{0}', space=vmem, size = 0x30000, scoped, tag = 'input window, operand 1, single buffered']
    #allocation6 [shape = 's32[1]{0}', space=sflag, size = 0x4, scoped, tag = 'scoped memory for tpu_custom_call.1']
    #allocation7 [shape = 'u8[2048]{0}', space=vmem, size = 0x800, scoped, tag = 'input window, operand 2, single buffered']
    #allocation8 [shape = 'u8[16384]{0}', space=vmem, size = 0x4000, scoped, tag = 'output window, operand 0, single buffered']
    %8 = vsyncpa [#allocation3], 0
    %9 = vsyncpa [#allocation6], 0
    %10 = vsyncpa [#allocation4], 0
    // Predicated region
    $region2: #{tpu_custom_call.1} parent=1 // pred_check
      _
    $region3: #{tpu_custom_call.1} parent=1 // pred_check_branch
      %12 = sbr.rel (0) target = $region5
    $region4: #{tpu_custom_call.1} parent=1 // pred_region
      %14 = vsyncadd [#allocation3], 0
      %s16 = sshll.u32 %s0, 4
      %s17 = int_to_ptr.hbm [resolvable:$true] %s16
      %s18 = sshll.u32 [#allocation2], 4
      %s19 = int_to_ptr.vmem [resolvable:$true] %s18
      %21 = dma.hbm_to_vmem [thread:$0]  %s17, 128, %s19, [#allocation3]
    $region5: #{tpu_custom_call.1} parent=1 // pred_fallthru
      _
    // Predicated region
    $region6: #{tpu_custom_call.1} parent=1 // pred_check
      _
    $region7: #{tpu_custom_call.1} parent=1 // pred_check_branch
      %23 = sbr.rel (0) target = $region9
    $region8: #{tpu_custom_call.1} parent=1 // pred_region
      %25 = vsyncadd [#allocation6], 0
      %s26 = sshll.u32 %s1, 4
      %s27 = int_to_ptr.hbm [resolvable:$true] %s26
      %s28 = sshll.u32 [#allocation5], 4
      %s29 = int_to_ptr.vmem [resolvable:$true] %s28
      %34 = dma.hbm_to_vmem [thread:$0]  %s27, 6144, %s29, [#allocation6], 512, 512, 32
    $region9: #{tpu_custom_call.1} parent=1 // pred_fallthru
      _
    // Predicated region
    $region10: #{tpu_custom_call.1} parent=1 // pred_check
      _
    $region11: #{tpu_custom_call.1} parent=1 // pred_check_branch
      %36 = sbr.rel (0) target = $region13
    $region12: #{tpu_custom_call.1} parent=1 // pred_region
      %38 = vsyncadd [#allocation6], 0
      %s40 = sshll.u32 %s2, 4
      %s41 = int_to_ptr.hbm [resolvable:$true] %s40
      %s42 = sshll.u32 [#allocation7], 4
      %s43 = int_to_ptr.vmem [resolvable:$true] %s42
      %45 = dma.hbm_to_vmem [thread:$0]  %s41, 64, %s43, [#allocation6]
    $region13: #{tpu_custom_call.1} parent=1 // pred_fallthru
      _
    // Predicated region
    $region14: #{tpu_custom_call.1} parent=1 // pred_check
      _
    $region15: #{tpu_custom_call.1} parent=1 // pred_check_branch
      %47 = sbr.rel (0) target = $region17
    $region16: #{tpu_custom_call.1} parent=1 // pred_region
      %49 = dma.done [#allocation3], 128
    $region17: #{tpu_custom_call.1} parent=1 // pred_fallthru
      _
    // Predicated region
    $region18: #{tpu_custom_call.1} parent=1 // pred_check
      _
    $region19: #{tpu_custom_call.1} parent=1 // pred_check_branch
      %51 = sbr.rel (0) target = $region21
    $region20: #{tpu_custom_call.1} parent=1 // pred_region
      %53 = dma.done [#allocation6], 6144
    $region21: #{tpu_custom_call.1} parent=1 // pred_fallthru
      _
    // Predicated region
    $region22: #{tpu_custom_call.1} parent=1 // pred_check
      _
    $region23: #{tpu_custom_call.1} parent=1 // pred_check_branch
      %55 = sbr.rel (0) target = $region25
    $region24: #{tpu_custom_call.1} parent=1 // pred_region
      %57 = dma.done [#allocation6], 64
    $region25: #{tpu_custom_call.1} parent=1 // pred_fallthru
      _
    %v58 = vld [vmem:[#allocation2] sm:$0xff]
    %v59 = vld [vmem:[#allocation5] sm:$0xff]
    %v60 = vld [vmem:[#allocation5 + $0x8] sm:$0xff]
    %v61 = vld [vmem:[#allocation5 + $0x10] sm:$0xff]
    %v62 = vld [vmem:[#allocation5 + $0x18] sm:$0xff]
    %v63 = vld [vmem:[#allocation5 + $0x20] sm:$0xff]
    %v64 = vld [vmem:[#allocation5 + $0x28] sm:$0xff]
    %v65 = vld [vmem:[#allocation5 + $0x30] sm:$0xff]
    %v66 = vld [vmem:[#allocation5 + $0x38] sm:$0xff]
    %v67 = vld [vmem:[#allocation5 + $0x40] sm:$0xff]
    %v68 = vld [vmem:[#allocation5 + $0x48] sm:$0xff]
    %v69 = vld [vmem:[#allocation5 + $0x50] sm:$0xff]
    %v70 = vld [vmem:[#allocation5 + $0x58] sm:$0xff]
    %v71 = vld [vmem:[#allocation5 + $0x60] sm:$0xff]
    %v72 = vld [vmem:[#allocation5 + $0x68] sm:$0xff]
    %v73 = vld [vmem:[#allocation5 + $0x70] sm:$0xff]
    %v74 = vld [vmem:[#allocation5 + $0x78] sm:$0xff]
    %v75 = vld [vmem:[#allocation5 + $0x80] sm:$0xff]
    %v76 = vld [vmem:[#allocation5 + $0x88] sm:$0xff]
    %v77 = vld [vmem:[#allocation5 + $0x90] sm:$0xff]
    %v78 = vld [vmem:[#allocation5 + $0x98] sm:$0xff]
    %v79 = vld [vmem:[#allocation5 + $0xa0] sm:$0xff]
    %v80 = vld [vmem:[#allocation5 + $0xa8] sm:$0xff]
    %v81 = vld [vmem:[#allocation5 + $0xb0] sm:$0xff]
    %v82 = vld [vmem:[#allocation5 + $0xb8] sm:$0xff]
    %v83 = vld [vmem:[#allocation5 + $0xc0] sm:$0xff]
    %v84 = vld [vmem:[#allocation5 + $0xc8] sm:$0xff]
    %v85 = vld [vmem:[#allocation5 + $0xd0] sm:$0xff]
    %v86 = vld [vmem:[#allocation5 + $0xd8] sm:$0xff]
    %v87 = vld [vmem:[#allocation5 + $0xe0] sm:$0xff]
    %v88 = vld [vmem:[#allocation5 + $0xe8] sm:$0xff]
    %v89 = vld [vmem:[#allocation5 + $0xf0] sm:$0xff]
    %v90 = vld [vmem:[#allocation5 + $0xf8] sm:$0xff]
    %v91 = vld [vmem:[#allocation5 + $0x100] sm:$0xff]
    %v92 = vld [vmem:[#allocation5 + $0x108] sm:$0xff]
    %v93 = vld [vmem:[#allocation5 + $0x110] sm:$0xff]
    %v94 = vld [vmem:[#allocation5 + $0x118] sm:$0xff]
    %v95 = vld [vmem:[#allocation5 + $0x120] sm:$0xff]
    %v96 = vld [vmem:[#allocation5 + $0x128] sm:$0xff]
    %v97 = vld [vmem:[#allocation5 + $0x130] sm:$0xff]
    %v98 = vld [vmem:[#allocation5 + $0x138] sm:$0xff]
    %v99 = vld [vmem:[#allocation5 + $0x140] sm:$0xff]
    %v100 = vld [vmem:[#allocation5 + $0x148] sm:$0xff]
    %v101 = vld [vmem:[#allocation5 + $0x150] sm:$0xff]
    %v102 = vld [vmem:[#allocation5 + $0x158] sm:$0xff]
    %v103 = vld [vmem:[#allocation5 + $0x160] sm:$0xff]
    %v104 = vld [vmem:[#allocation5 + $0x168] sm:$0xff]
    %v105 = vld [vmem:[#allocation5 + $0x170] sm:$0xff]
    %v106 = vld [vmem:[#allocation5 + $0x178] sm:$0xff]
    %v107 = vld [vmem:[#allocation7] sm:$0xf]
    %v109 = vperm.slane %v107, 0
    %v110 = vperm.slane %v107, 1
    %v111 = vperm.slane %v107, 2
    %v112 = vperm.slane %v107, 3
    %vm117 = vcmask 785408
    %v119 = vsel %vm117, %v58, 0
    %121 = vmatpush.msra.mxu0 0.0
    %122 = vmatpush.msra.mxu0 0.0
    %123 = vmatpush.msra.mxu0 0.0
    %124 = vmatpush.msra.mxu0 0.0
    %125 = vmatpush.msra.mxu0 %v103
    %126 = vmatpush.msra.mxu0 %v99
    %127 = vmatpush.msra.mxu0 %v95
    %128 = vmatpush.msra.mxu0 %v91
    %129 = vmatpush.msra.mxu0 %v87
    %130 = vmatpush.msra.mxu0 %v83
    %131 = vmatpush.msra.mxu0 %v79
    %132 = vmatpush.msra.mxu0 %v75
    %133 = vmatpush.msra.mxu0 %v71
    %134 = vmatpush.msra.mxu0 %v67
    %135 = vmatpush.msra.mxu0 %v63
    %136 = vmatpush.msra.mxu0 %v59
    %137 = vmatmul.f32.gmra.mxu0 %v119
    %v138 = vpop.f32.mrf.mxu0
    %v139 = vadd.f32 %v109, %v138
    %140 = vdwg.mxu0
    %141 = vmatpush.msra.mxu0 0.0
    %142 = vmatpush.msra.mxu0 0.0
    %143 = vmatpush.msra.mxu0 0.0
    %144 = vmatpush.msra.mxu0 0.0
    %145 = vmatpush.msra.mxu0 %v104
    %146 = vmatpush.msra.mxu0 %v100
    %147 = vmatpush.msra.mxu0 %v96
    %148 = vmatpush.msra.mxu0 %v92
    %149 = vmatpush.msra.mxu0 %v88
    %150 = vmatpush.msra.mxu0 %v84
    %151 = vmatpush.msra.mxu0 %v80
    %152 = vmatpush.msra.mxu0 %v76
    %153 = vmatpush.msra.mxu0 %v72
    %154 = vmatpush.msra.mxu0 %v68
    %155 = vmatpush.msra.mxu0 %v64
    %156 = vmatpush.msra.mxu0 %v60
    %157 = vmatmul.f32.gmra.mxu0 %v119
    %v158 = vpop.f32.mrf.mxu0
    %v159 = vadd.f32 %v110, %v158
    %160 = vdwg.mxu0
    %161 = vmatpush.msra.mxu0 0.0
    %162 = vmatpush.msra.mxu0 0.0
    %163 = vmatpush.msra.mxu0 0.0
    %164 = vmatpush.msra.mxu0 0.0
    %165 = vmatpush.msra.mxu0 %v105
    %166 = vmatpush.msra.mxu0 %v101
    %167 = vmatpush.msra.mxu0 %v97
    %168 = vmatpush.msra.mxu0 %v93
    %169 = vmatpush.msra.mxu0 %v89
    %170 = vmatpush.msra.mxu0 %v85
    %171 = vmatpush.msra.mxu0 %v81
    %172 = vmatpush.msra.mxu0 %v77
    %173 = vmatpush.msra.mxu0 %v73
    %174 = vmatpush.msra.mxu0 %v69
    %175 = vmatpush.msra.mxu0 %v65
    %176 = vmatpush.msra.mxu0 %v61
    %177 = vmatmul.f32.gmra.mxu0 %v119
    %v178 = vpop.f32.mrf.mxu0
    %v179 = vadd.f32 %v111, %v178
    %180 = vdwg.mxu0
    %181 = vmatpush.msra.mxu0 0.0
    %182 = vmatpush.msra.mxu0 0.0
    %183 = vmatpush.msra.mxu0 0.0
    %184 = vmatpush.msra.mxu0 0.0
    %185 = vmatpush.msra.mxu0 %v106
    %186 = vmatpush.msra.mxu0 %v102
    %187 = vmatpush.msra.mxu0 %v98
    %188 = vmatpush.msra.mxu0 %v94
    %189 = vmatpush.msra.mxu0 %v90
    %190 = vmatpush.msra.mxu0 %v86
    %191 = vmatpush.msra.mxu0 %v82
    %192 = vmatpush.msra.mxu0 %v78
    %193 = vmatpush.msra.mxu0 %v74
    %194 = vmatpush.msra.mxu0 %v70
    %195 = vmatpush.msra.mxu0 %v66
    %196 = vmatpush.msra.mxu0 %v62
    %197 = vmatmul.f32.gmra.mxu0 %v119
    %v198 = vpop.f32.mrf.mxu0
    %v199 = vadd.f32 %v112, %v198
    %200 = vdwg.mxu0
    %201 = vst [vmem:[#allocation8] sm:$0xff] %v139
    %202 = vst [vmem:[#allocation8 + $0x8] sm:$0xff] %v159
    %203 = vst [vmem:[#allocation8 + $0x10] sm:$0xff] %v179
    %204 = vst [vmem:[#allocation8 + $0x18] sm:$0xff] %v199
    // Predicated region
    $region26: #{tpu_custom_call.1} parent=1 // pred_check
      _
    $region27: #{tpu_custom_call.1} parent=1 // pred_check_branch
      %206 = sbr.rel (0) target = $region29
    $region28: #{tpu_custom_call.1} parent=1 // pred_region
      %208 = vsyncadd [#allocation4], 0
      %s210 = sshll.u32 [#allocation8], 4
      %s211 = int_to_ptr.vmem [resolvable:$true] %s210
      %s212 = sshll.u32 %s3, 4
      %s213 = int_to_ptr.hbm [resolvable:$true] %s212
      %215 = dma.vmem_to_hbm [thread:$0]  %s211, 512, %s213, [#allocation4]
    $region29: #{tpu_custom_call.1} parent=1 // pred_fallthru
      _
    // Predicated region
    $region30: #{tpu_custom_call.1} parent=1 // pred_check
      _
    $region31: #{tpu_custom_call.1} parent=1 // pred_check_branch
      %217 = sbr.rel (0) target = $region33
    $region32: #{tpu_custom_call.1} parent=1 // pred_region
      %219 = dma.done [#allocation4], 512
    $region33: #{tpu_custom_call.1} parent=1 // pred_fallthru
      _
    %220 = vsyncpa [#allocation3], 1
    %221 = vsyncpa [#allocation6], 1
    %222 = vsyncpa [#allocation4], 1

</llo_original>
